<compile_context>
chip_gen: v5e
topology: v5e:2x2
jax: 0.10.0
libtpu: 0.0.40
codegen_flags: <defaults>
</compile_context>

<pallas_src>
import jax
import jax.numpy as jnp
from jax.experimental import pallas as pl
from jax.experimental.pallas import tpu as pltpu


_ONEHOT_PAD = 16  # 5 + 5 one-hot lanes, zero-padded to an 8-aligned row count


def _mlp_combine_kernel(
    x1_ref, x2_ref, y1_ref, y2_ref,
    w1a_ref, w1b_ref, w1y_ref, c1_ref,
    w2_ref, c2_ref,
    w3_ref, b3_ref,
    out_ref,
):
    tb = x1_ref.shape[0]
    x1 = x1_ref[...]
    x2 = x2_ref[...]

    # one_hot(y1,5) ++ one_hot(y2,5) built in-register (lanes 10..15 stay 0).
    lane = jax.lax.broadcasted_iota(jnp.int32, (tb, _ONEHOT_PAD), 1)
    oh = jnp.logical_or(lane == y1_ref[...], lane == (y2_ref[...] + 5))
    oh = oh.astype(jnp.float32)

    # --- Layer 1: Linear(no bias) + folded BatchNorm + ReLU ------------------
    z = jnp.dot(x1, w1a_ref[...], preferred_element_type=jnp.float32)
    z = z + jnp.dot(x2, w1b_ref[...], preferred_element_type=jnp.float32)
    z = z + jnp.dot(oh, w1y_ref[...], preferred_element_type=jnp.float32)
    z = jnp.maximum(z + c1_ref[...], 0.0)
    # Dropout1d(0.05): identity in eval mode.

    # --- Layer 2: Linear(no bias) + folded BatchNorm + ReLU ------------------
    z = jnp.dot(z, w2_ref[...], preferred_element_type=jnp.float32)
    z = jnp.maximum(z + c2_ref[...], 0.0)
    # Dropout1d(0.05): identity in eval mode.

    # --- Layer 3 (with bias) + residual average ------------------------------
    z = jnp.dot(z, w3_ref[...], preferred_element_type=jnp.float32) + b3_ref[...]
    out_ref[...] = ((x1 + x2) * 0.5 + z).astype(out_ref.dtype)


def _round_up(x, m):
    return ((x + m - 1) // m) * m


def mlp_combine(x1, x2, y1, y2, params, *, block_b=512):
    """Pallas-backed forward of MLPCombine. x1,x2: (B,F) f32; y1,y2: (B,) int."""
    B, F = x1.shape
    (w1, g1, b1, m1, v1, w2, g2, b2, m2, v2, w3, b3) = params
    eps = 1e-5

    # Fold eval-mode BatchNorm into the preceding (bias-free) Linear layers.
    s1 = g1 * jax.lax.rsqrt(v1 + eps)              # (1, F)
    w1f = w1 * s1                                  # (2F+10, F)
    c1 = b1 - m1 * s1                              # (1, F)
    s2 = g2 * jax.lax.rsqrt(v2 + eps)
    w2f = w2 * s2                                  # (F, F)
    c2 = b2 - m2 * s2                              # (1, F)

    # Split W1 so x1 / x2 / one-hot contributions are computed directly
    # (no concatenated `h` activation in HBM, no K=74 contraction).
    w1a = w1f[:F]                                  # (F, F)   acts on x1
    w1b = w1f[F:2 * F]                             # (F, F)   acts on x2
    w1y = jnp.zeros((_ONEHOT_PAD, F), w1f.dtype).at[:10].set(w1f[2 * F:])

    # Batch tiling: TB rows per grid step (multiple of 8 sublanes).
    TB = _round_up(min(block_b, B), 8)
    Bp = _round_up(B, TB)
    pad = Bp - B
    if pad:
        x1 = jnp.pad(x1, ((0, pad), (0, 0)))
        x2 = jnp.pad(x2, ((0, pad), (0, 0)))
        y1 = jnp.pad(y1, (0, pad))
        y2 = jnp.pad(y2, (0, pad))
    y1c = y1.astype(jnp.int32).reshape(Bp, 1)
    y2c = y2.astype(jnp.int32).reshape(Bp, 1)

    grid = (Bp // TB,)
    row_spec = lambda shape: pl.BlockSpec(shape, lambda i: (i, 0))
    const_spec = lambda shape: pl.BlockSpec(shape, lambda i: (0, 0))

    flops = 2 * Bp * F * (4 * F + _ONEHOT_PAD)
    bytes_accessed = 4 * (4 * Bp * F + 2 * Bp
                          + 3 * F * F + _ONEHOT_PAD * F + 3 * F)

    out = pl.pallas_call(
        _mlp_combine_kernel,
        out_shape=jax.ShapeDtypeStruct((Bp, F), x1.dtype),
        grid=grid,
        in_specs=[
            row_spec((TB, F)),            # x1
            row_spec((TB, F)),            # x2
            row_spec((TB, 1)),            # y1
            row_spec((TB, 1)),            # y2
            const_spec((F, F)),           # W1 (x1 part, BN-folded)
            const_spec((F, F)),           # W1 (x2 part, BN-folded)
            const_spec((_ONEHOT_PAD, F)), # W1 (one-hot part, BN-folded, padded)
            const_spec((1, F)),           # folded BN1 bias
            const_spec((F, F)),           # W2 (BN-folded)
            const_spec((1, F)),           # folded BN2 bias
            const_spec((F, F)),           # W3
            const_spec((1, F)),           # b3
        ],
        out_specs=row_spec((TB, F)),
        compiler_params=pltpu.CompilerParams(
            dimension_semantics=("parallel",),
        ),
        cost_estimate=pl.CostEstimate(
            flops=flops, transcendentals=0, bytes_accessed=bytes_accessed),
    )(x1, x2, y1c, y2c, w1a, w1b, w1y, c1, w2f, c2, w3, b3)

    return out[:B]


def init_params(key, feature_dim):
    """Deterministic parameter init mirroring nn.Linear/nn.BatchNorm1d shapes."""
    F = feature_dim
    d_in = 2 * F + 10
    k1, k2, k3, k4 = jax.random.split(key, 4)

    def linear_w(k, fan_in, fan_out):
        # PyTorch default: U(-1/sqrt(fan_in), 1/sqrt(fan_in)); stored transposed.
        bound = 1.0 / jnp.sqrt(fan_in)
        return jax.random.uniform(k, (fan_in, fan_out), jnp.float32, -bound, bound)

    w1 = linear_w(k1, d_in, F)
    w2 = linear_w(k2, F, F)
    w3 = linear_w(k3, F, F)
    bound3 = 1.0 / jnp.sqrt(F)
    b3 = jax.random.uniform(k4, (1, F), jnp.float32, -bound3, bound3)

    ones = jnp.ones((1, F), jnp.float32)
    zeros = jnp.zeros((1, F), jnp.float32)
    # BatchNorm1d defaults: gamma=1, beta=0, running_mean=0, running_var=1.
    g1, b1, m1, v1 = ones, zeros, zeros, ones
    g2, b2, m2, v2 = ones, zeros, zeros, ones

    return (w1, g1, b1, m1, v1, w2, g2, b2, m2, v2, w3, b3)


def mlp_combine_ref(x1, x2, y1, y2, params):
    """Pure-JAX reference (unfolded BN, explicit one-hot/concat) for validation."""
    (w1, g1, b1, m1, v1, w2, g2, b2, m2, v2, w3, b3) = params
    eps = 1e-5
    y1h = jax.nn.one_hot(y1, 5, dtype=x1.dtype)
    y2h = jax.nn.one_hot(y2, 5, dtype=x1.dtype)
    h = jnp.concatenate([x1, x2, y1h, y2h], axis=-1)
    z = h @ w1
    z = (z - m1) * jax.lax.rsqrt(v1 + eps) * g1 + b1
    z = jnp.maximum(z, 0.0)
    z = z @ w2
    z = (z - m2) * jax.lax.rsqrt(v2 + eps) * g2 + b2
    z = jnp.maximum(z, 0.0)
    z = z @ w3 + b3
    return (x1 + x2) * 0.5 + z


if __name__ == "__main__":
    B = 16
    FEATURE_DIM = 32

    key = jax.random.PRNGKey(0)
    kx1, kx2, ky1, ky2, kp = jax.random.split(key, 5)

    x1 = jax.random.normal(kx1, (B, FEATURE_DIM), jnp.float32)
    x2 = jax.random.normal(kx2, (B, FEATURE_DIM), jnp.float32)
    y1 = jax.random.randint(ky1, (B,), 0, 5, jnp.int32)
    y2 = jax.random.randint(ky2, (B,), 0, 5, jnp.int32)

    params = init_params(kp, FEATURE_DIM)

    # block_b=8 -> two batch tiles, exercising the pipelined grid path.
    out = mlp_combine(x1, x2, y1, y2, params, block_b=8)
    out = jax.block_until_ready(out)

    ref = mlp_combine_ref(x1, x2, y1, y2, params)
    assert out.shape == (B, FEATURE_DIM)
    assert jnp.allclose(out, ref, atol=1e-4, rtol=1e-5), "mismatch vs reference"

    print("KERNEL_OK")
</pallas_src>

<mosaic_0001>
module attributes {stable_mosaic.version = 11 : i64} {
  func.func @_mlp_combine_kernel(%arg0: i32, %arg1: memref<8x32xf32, #tpu.memory_space<vmem>>, %arg2: memref<8x32xf32, #tpu.memory_space<vmem>>, %arg3: memref<8x1xi32, #tpu.memory_space<vmem>>, %arg4: memref<8x1xi32, #tpu.memory_space<vmem>>, %arg5: memref<32x32xf32, #tpu.memory_space<vmem>>, %arg6: memref<32x32xf32, #tpu.memory_space<vmem>>, %arg7: memref<16x32xf32, #tpu.memory_space<vmem>>, %arg8: memref<1x32xf32, #tpu.memory_space<vmem>>, %arg9: memref<32x32xf32, #tpu.memory_space<vmem>>, %arg10: memref<1x32xf32, #tpu.memory_space<vmem>>, %arg11: memref<32x32xf32, #tpu.memory_space<vmem>>, %arg12: memref<1x32xf32, #tpu.memory_space<vmem>>, %arg13: memref<8x32xf32, #tpu.memory_space<vmem>>) attributes {dimension_semantics = [#tpu.dimension_semantics<parallel>], iteration_bounds = array<i64: 2>, scalar_prefetch = 0 : i64, scratch_operands = 0 : i64, tpu.core_type = #tpu.core_type<tc>, window_params = [{transform_indices = @transform_0, window_bounds = array<i64: 8, 32>}, {transform_indices = @transform_1, window_bounds = array<i64: 8, 32>}, {transform_indices = @transform_2, window_bounds = array<i64: 8, 1>}, {transform_indices = @transform_3, window_bounds = array<i64: 8, 1>}, {pipeline_mode = #tpu.pipeline_mode<synchronous>, transform_indices = @transform_4, window_bounds = array<i64: 32, 32>}, {pipeline_mode = #tpu.pipeline_mode<synchronous>, transform_indices = @transform_5, window_bounds = array<i64: 32, 32>}, {pipeline_mode = #tpu.pipeline_mode<synchronous>, transform_indices = @transform_6, window_bounds = array<i64: 16, 32>}, {pipeline_mode = #tpu.pipeline_mode<synchronous>, transform_indices = @transform_7, window_bounds = array<i64: 1, 32>}, {pipeline_mode = #tpu.pipeline_mode<synchronous>, transform_indices = @transform_8, window_bounds = array<i64: 32, 32>}, {pipeline_mode = #tpu.pipeline_mode<synchronous>, transform_indices = @transform_9, window_bounds = array<i64: 1, 32>}, {pipeline_mode = #tpu.pipeline_mode<synchronous>, transform_indices = @transform_10, window_bounds = array<i64: 32, 32>}, {pipeline_mode = #tpu.pipeline_mode<synchronous>, transform_indices = @transform_11, window_bounds = array<i64: 1, 32>}, {transform_indices = @transform_12, window_bounds = array<i64: 8, 32>}]} {
    %c0 = arith.constant 0 : index
    %c0_0 = arith.constant 0 : index
    %0 = vector.load %arg1[%c0, %c0_0] : memref<8x32xf32, #tpu.memory_space<vmem>>, vector<8x32xf32>
    %c0_1 = arith.constant 0 : index
    %c0_2 = arith.constant 0 : index
    %1 = vector.load %arg2[%c0_1, %c0_2] : memref<8x32xf32, #tpu.memory_space<vmem>>, vector<8x32xf32>
    %2 = tpu.iota {dimensions = array<i32: 1>} : vector<8x16xi32>
    %c0_3 = arith.constant 0 : index
    %c0_4 = arith.constant 0 : index
    %3 = vector.load %arg3[%c0_3, %c0_4] : memref<8x1xi32, #tpu.memory_space<vmem>>, vector<8x1xi32>
    %4 = vector.broadcast %3 : vector<8x1xi32> to vector<8x16xi32>
    %5 = arith.cmpi eq, %2, %4 : vector<8x16xi32>
    %c0_5 = arith.constant 0 : index
    %c0_6 = arith.constant 0 : index
    %6 = vector.load %arg4[%c0_5, %c0_6] : memref<8x1xi32, #tpu.memory_space<vmem>>, vector<8x1xi32>
    %c5_i32 = arith.constant 5 : i32
    %7 = vector.broadcast %c5_i32 : i32 to vector<8x1xi32>
    %8 = arith.addi %6, %7 : vector<8x1xi32>
    %9 = vector.broadcast %8 : vector<8x1xi32> to vector<8x16xi32>
    %10 = arith.cmpi eq, %2, %9 : vector<8x16xi32>
    %11 = arith.ori %5, %10 : vector<8x16xi1>
    %12 = arith.extui %11 : vector<8x16xi1> to vector<8x16xi32>
    %13 = arith.sitofp %12 : vector<8x16xi32> to vector<8x16xf32>
    %c0_7 = arith.constant 0 : index
    %c0_8 = arith.constant 0 : index
    %14 = vector.load %arg5[%c0_7, %c0_8] : memref<32x32xf32, #tpu.memory_space<vmem>>, vector<32x32xf32>
    %cst = arith.constant dense<0.000000e+00> : vector<8x32xf32>
    %15 = tpu.matmul %0, %14, %cst {dimension_numbers = #tpu.dot_dimension_numbers<[1], [0], [0], [1], [0, 0, 1, 1], [], []>} : vector<8x32xf32>, vector<32x32xf32>, vector<8x32xf32> -> vector<8x32xf32>
    %c0_9 = arith.constant 0 : index
    %c0_10 = arith.constant 0 : index
    %16 = vector.load %arg6[%c0_9, %c0_10] : memref<32x32xf32, #tpu.memory_space<vmem>>, vector<32x32xf32>
    %cst_11 = arith.constant dense<0.000000e+00> : vector<8x32xf32>
    %17 = tpu.matmul %1, %16, %cst_11 {dimension_numbers = #tpu.dot_dimension_numbers<[1], [0], [0], [1], [0, 0, 1, 1], [], []>} : vector<8x32xf32>, vector<32x32xf32>, vector<8x32xf32> -> vector<8x32xf32>
    %18 = arith.addf %15, %17 : vector<8x32xf32>
    %c0_12 = arith.constant 0 : index
    %c0_13 = arith.constant 0 : index
    %19 = vector.load %arg7[%c0_12, %c0_13] : memref<16x32xf32, #tpu.memory_space<vmem>>, vector<16x32xf32>
    %cst_14 = arith.constant dense<0.000000e+00> : vector<8x32xf32>
    %20 = tpu.matmul %13, %19, %cst_14 {dimension_numbers = #tpu.dot_dimension_numbers<[1], [0], [0], [1], [0, 0, 1, 1], [], []>} : vector<8x16xf32>, vector<16x32xf32>, vector<8x32xf32> -> vector<8x32xf32>
    %21 = arith.addf %18, %20 : vector<8x32xf32>
    %c0_15 = arith.constant 0 : index
    %c0_16 = arith.constant 0 : index
    %22 = vector.load %arg8[%c0_15, %c0_16] : memref<1x32xf32, #tpu.memory_space<vmem>>, vector<1x32xf32>
    %23 = vector.broadcast %22 : vector<1x32xf32> to vector<8x32xf32>
    %24 = arith.addf %21, %23 : vector<8x32xf32>
    %cst_17 = arith.constant 0.000000e+00 : f32
    %25 = vector.broadcast %cst_17 : f32 to vector<8x32xf32>
    %26 = arith.maximumf %24, %25 : vector<8x32xf32>
    %c0_18 = arith.constant 0 : index
    %c0_19 = arith.constant 0 : index
    %27 = vector.load %arg9[%c0_18, %c0_19] : memref<32x32xf32, #tpu.memory_space<vmem>>, vector<32x32xf32>
    %cst_20 = arith.constant dense<0.000000e+00> : vector<8x32xf32>
    %28 = tpu.matmul %26, %27, %cst_20 {dimension_numbers = #tpu.dot_dimension_numbers<[1], [0], [0], [1], [0, 0, 1, 1], [], []>} : vector<8x32xf32>, vector<32x32xf32>, vector<8x32xf32> -> vector<8x32xf32>
    %c0_21 = arith.constant 0 : index
    %c0_22 = arith.constant 0 : index
    %29 = vector.load %arg10[%c0_21, %c0_22] : memref<1x32xf32, #tpu.memory_space<vmem>>, vector<1x32xf32>
    %30 = vector.broadcast %29 : vector<1x32xf32> to vector<8x32xf32>
    %31 = arith.addf %28, %30 : vector<8x32xf32>
    %cst_23 = arith.constant 0.000000e+00 : f32
    %32 = vector.broadcast %cst_23 : f32 to vector<8x32xf32>
    %33 = arith.maximumf %31, %32 : vector<8x32xf32>
    %c0_24 = arith.constant 0 : index
    %c0_25 = arith.constant 0 : index
    %34 = vector.load %arg11[%c0_24, %c0_25] : memref<32x32xf32, #tpu.memory_space<vmem>>, vector<32x32xf32>
    %cst_26 = arith.constant dense<0.000000e+00> : vector<8x32xf32>
    %35 = tpu.matmul %33, %34, %cst_26 {dimension_numbers = #tpu.dot_dimension_numbers<[1], [0], [0], [1], [0, 0, 1, 1], [], []>} : vector<8x32xf32>, vector<32x32xf32>, vector<8x32xf32> -> vector<8x32xf32>
    %c0_27 = arith.constant 0 : index
    %c0_28 = arith.constant 0 : index
    %36 = vector.load %arg12[%c0_27, %c0_28] : memref<1x32xf32, #tpu.memory_space<vmem>>, vector<1x32xf32>
    %37 = vector.broadcast %36 : vector<1x32xf32> to vector<8x32xf32>
    %38 = arith.addf %35, %37 : vector<8x32xf32>
    %39 = arith.addf %0, %1 : vector<8x32xf32>
    %cst_29 = arith.constant 5.000000e-01 : f32
    %40 = vector.broadcast %cst_29 : f32 to vector<8x32xf32>
    %41 = arith.mulf %39, %40 : vector<8x32xf32>
    %42 = arith.addf %41, %38 : vector<8x32xf32>
    %c0_30 = arith.constant 0 : index
    %c0_31 = arith.constant 0 : index
    %43 = vector.load %arg13[%c0_30, %c0_31] : memref<8x32xf32, #tpu.memory_space<vmem>>, vector<8x32xf32>
    tpu.vector_store %arg13[%c0_30, %c0_31], %42 {strides = array<i32>} : memref<8x32xf32, #tpu.memory_space<vmem>>, vector<8x32xf32>,
    return
  }
  func.func @transform_0(%arg0: i32) -> (i32, i32) {
    %c0_i32 = arith.constant 0 : i32
    %c0_i32_0 = arith.constant 0 : i32
    return %arg0, %c0_i32 : i32, i32
  }
  func.func @transform_1(%arg0: i32) -> (i32, i32) {
    %c0_i32 = arith.constant 0 : i32
    %c0_i32_0 = arith.constant 0 : i32
    return %arg0, %c0_i32 : i32, i32
  }
  func.func @transform_2(%arg0: i32) -> (i32, i32) {
    %c0_i32 = arith.constant 0 : i32
    %c0_i32_0 = arith.constant 0 : i32
    return %arg0, %c0_i32 : i32, i32
  }
  func.func @transform_3(%arg0: i32) -> (i32, i32) {
    %c0_i32 = arith.constant 0 : i32
    %c0_i32_0 = arith.constant 0 : i32
    return %arg0, %c0_i32 : i32, i32
  }
  func.func @transform_4(%arg0: i32) -> (i32, i32) {
    %c0_i32 = arith.constant 0 : i32
    %c0_i32_0 = arith.constant 0 : i32
    %c0_i32_1 = arith.constant 0 : i32
    return %c0_i32, %c0_i32_0 : i32, i32
  }
  func.func @transform_5(%arg0: i32) -> (i32, i32) {
    %c0_i32 = arith.constant 0 : i32
    %c0_i32_0 = arith.constant 0 : i32
    %c0_i32_1 = arith.constant 0 : i32
    return %c0_i32, %c0_i32_0 : i32, i32
  }
  func.func @transform_6(%arg0: i32) -> (i32, i32) {
    %c0_i32 = arith.constant 0 : i32
    %c0_i32_0 = arith.constant 0 : i32
    %c0_i32_1 = arith.constant 0 : i32
    return %c0_i32, %c0_i32_0 : i32, i32
  }
  func.func @transform_7(%arg0: i32) -> (i32, i32) {
    %c0_i32 = arith.constant 0 : i32
    %c0_i32_0 = arith.constant 0 : i32
    %c0_i32_1 = arith.constant 0 : i32
    return %c0_i32, %c0_i32_0 : i32, i32
  }
  func.func @transform_8(%arg0: i32) -> (i32, i32) {
    %c0_i32 = arith.constant 0 : i32
    %c0_i32_0 = arith.constant 0 : i32
    %c0_i32_1 = arith.constant 0 : i32
    return %c0_i32, %c0_i32_0 : i32, i32
  }
  func.func @transform_9(%arg0: i32) -> (i32, i32) {
    %c0_i32 = arith.constant 0 : i32
    %c0_i32_0 = arith.constant 0 : i32
    %c0_i32_1 = arith.constant 0 : i32
    return %c0_i32, %c0_i32_0 : i32, i32
  }
  func.func @transform_10(%arg0: i32) -> (i32, i32) {
    %c0_i32 = arith.constant 0 : i32
    %c0_i32_0 = arith.constant 0 : i32
    %c0_i32_1 = arith.constant 0 : i32
    return %c0_i32, %c0_i32_0 : i32, i32
  }
  func.func @transform_11(%arg0: i32) -> (i32, i32) {
    %c0_i32 = arith.constant 0 : i32
    %c0_i32_0 = arith.constant 0 : i32
    %c0_i32_1 = arith.constant 0 : i32
    return %c0_i32, %c0_i32_0 : i32, i32
  }
  func.func @transform_12(%arg0: i32) -> (i32, i32) {
    %c0_i32 = arith.constant 0 : i32
    %c0_i32_0 = arith.constant 0 : i32
    return %arg0, %c0_i32 : i32, i32
  }
}

</mosaic_0001>

<llo_original>
// kernel: tpu_custom_call.1
$region0: #{tpu_custom_call.1}
  #allocation0 [shape = 'u32[]', space=smem, size = 0x4, offset = 0x4, fixed_abs, tag = 'smem constant byte address 0x4 - core index']
  #allocation1 [shape = 'u32[72,128]{1,0:T(1,128)}', space=vmem, size = 0x9000, scoped, tag = 'internal scratch']
  %s0 = inlined_call_operand.hbm [shape: f32[16,32], index: 0, kind: input, shape index: {}]
  %s1 = inlined_call_operand.hbm [shape: f32[16,32], index: 1, kind: input, shape index: {}]
  %s2 = inlined_call_operand.vmem [shape: s32[16,1], index: 2, kind: input, shape index: {}]
  %s3 = inlined_call_operand.vmem [shape: s32[16,1], index: 3, kind: input, shape index: {}]
  %s4 = inlined_call_operand.vmem [shape: f32[32,32], index: 4, kind: input, shape index: {}]
  %s5 = inlined_call_operand.hbm [shape: f32[32,32], index: 5, kind: input, shape index: {}]
  %s6 = inlined_call_operand.hbm [shape: f32[16,32], index: 6, kind: input, shape index: {}]
  %s7 = inlined_call_operand.vmem [shape: f32[1,32], index: 7, kind: input, shape index: {}]
  %s8 = inlined_call_operand.hbm [shape: f32[32,32], index: 8, kind: input, shape index: {}]
  %s9 = inlined_call_operand.vmem [shape: f32[1,32], index: 9, kind: input, shape index: {}]
  %s10 = inlined_call_operand.hbm [shape: f32[32,32], index: 10, kind: input, shape index: {}]
  %s11 = inlined_call_operand.vmem [shape: f32[1,32], index: 11, kind: input, shape index: {}]
  %s12 = inlined_call_operand.hbm [shape: f32[16,32], index: 12, kind: output, shape index: {}]
  %s13 = sld [smem:[#allocation0]]
  $region105: #{tpu_custom_call.1} parent=0
    _
  %s15 = ssub.s32 1, %s13
  %s16 = scalar_select 0, %s15, %s13
  $region1: #{tpu_custom_call.1} parent=0
    #allocation2 [shape = 'u8[8192]{0}', space=vmem, size = 0x2000, scoped, tag = 'input window, operand 0']
    #allocation3 [shape = 's32[2]{0}', space=sflag, size = 0x8, scoped, tag = 'scoped memory for tpu_custom_call.1']
    #allocation4 [shape = 's32[2]{0}', space=sflag, size = 0x8, scoped, tag = 'scoped memory for tpu_custom_call.1']
    #allocation5 [shape = 'u8[8192]{0}', space=vmem, size = 0x2000, scoped, tag = 'input window, operand 1']
    #allocation6 [shape = 's32[2]{0}', space=sflag, size = 0x8, scoped, tag = 'scoped memory for tpu_custom_call.1']
    #allocation7 [shape = 'u8[16384]{0}', space=vmem, size = 0x4000, scoped, tag = 'input window, operand 5, single buffered']
    #allocation8 [shape = 'u8[8192]{0}', space=vmem, size = 0x2000, scoped, tag = 'input window, operand 6, single buffered']
    #allocation9 [shape = 's32[1]{0}', space=sflag, size = 0x4, scoped, tag = 'scoped memory for tpu_custom_call.1']
    #allocation10 [shape = 'u8[16384]{0}', space=vmem, size = 0x4000, scoped, tag = 'input window, operand 8, single buffered']
    #allocation11 [shape = 'u8[16384]{0}', space=vmem, size = 0x4000, scoped, tag = 'input window, operand 10, single buffered']
    #allocation12 [shape = 's32[1]{0}', space=sflag, size = 0x4, scoped, tag = 'scoped memory for tpu_custom_call.1']
    #allocation13 [shape = 'u8[8192]{0}', space=vmem, size = 0x2000, scoped, tag = 'output window, operand 0']
    %17 = vsyncpa [#allocation3], 0
    %s18 = scalar_lea.sflag [#allocation3], 1
    %19 = vsyncpa %s18, 0
    %20 = vsyncpa [#allocation6], 0
    %s21 = scalar_lea.sflag [#allocation6], 1
    %22 = vsyncpa %s21, 0
    %23 = vsyncpa [#allocation9], 0
    %24 = vsyncpa [#allocation12], 0
    %25 = vsyncpa [#allocation4], 0
    %s26 = scalar_lea.sflag [#allocation4], 1
    %27 = vsyncpa %s26, 0
    loop: start=0, step=1, limit=4
    $region2: #{tpu_custom_call.1} parent=1 // loop_pre_header
      _
    $region3: #{tpu_custom_call.1} parent=1 // loop_header
      %s29 = sphi 0, %s33
      %p30 = scmp.ge.s32.totalorder %s29, 4
      %s39 = sphi 0, %s41
      %s42 = sphi 0, %s39
      %s43 = sphi 0, %s42
      %s59 = sphi 0, %s43
      %s65 = sphi 0, %s67
      %s68 = sphi 0, %s65
      %s69 = sphi 0, %s68
      %s85 = sphi 0, %s69
      %s91 = sphi 0, %s93
      %s94 = sphi 0, %s91
      %s95 = sphi 0, %s94
      %s111 = sphi 0, %s95
      %s117 = sphi 0, %s119
      %s120 = sphi 0, %s117
      %s121 = sphi 0, %s120
      %s137 = sphi 0, %s121
      %s141 = sphi 0, %s141
      %s143 = sphi 0, %s141
      %s144 = sphi 0, %s143
      %s158 = sphi 0, %s144
      %s162 = sphi 0, %s162
      %s164 = sphi 0, %s162
      %s165 = sphi 0, %s164
      %s179 = sphi 0, %s165
      %s183 = sphi 0, %s183
      %s185 = sphi 0, %s183
      %s186 = sphi 0, %s185
      %s200 = sphi 0, %s186
      %s204 = sphi 0, %s204
      %s206 = sphi 0, %s204
      %s207 = sphi 0, %s206
      %s221 = sphi 0, %s207
      %s225 = sphi 0, %s225
      %s227 = sphi 0, %s225
      %s228 = sphi 0, %s227
      %s242 = sphi 0, %s228
      %s246 = sphi 0, %s246
      %s248 = sphi 0, %s246
      %s249 = sphi 0, %s248
      %s263 = sphi 0, %s249
      %s267 = sphi 0, %s267
      %s269 = sphi 0, %s267
      %s270 = sphi 0, %s269
      %s284 = sphi 0, %s270
      %s288 = sphi 0, %s288
      %s290 = sphi 0, %s288
      %s291 = sphi 0, %s290
      %s305 = sphi 0, %s291
      %s311 = sphi 0, %s313
      %s314 = sphi 0, %s311
      %s315 = sphi 0, %s314
      %s331 = sphi 0, %s315
    $region4: #{tpu_custom_call.1} parent=1 // loop_header_branch
      %32 = sbr.rel (%p30) target = $region8
    $region5: #{tpu_custom_call.1} parent=1 // loop_body
      %s34 = ssub.s32 %s29, 1
      %s35 = ssub.s32 %s29, 2
      %s36 = sadd.s32 %s29, 1
      %s37 = ssub.s32 %s29, %s36
      %p38 = scmp.eq.s32.totalorder %s37, 0
      %s40 = sadd.s32 %s39, 1
      %s41 = scalar_select %p38, %s39, %s40
      %p44 = pneg %p38
      %p45 = scmp.eq.s32.totalorder %s29, 1
      %p46 = por %p44, %p45
      %p47 = scmp.ne.s32.totalorder %s39, %s42
      %p48 = scmp.eq.s32.totalorder %s29, 0
      %p49 = por %p47, %p48
      %p50 = scmp.ne.s32.totalorder %s39, %s42
      %p51 = scmp.eq.s32.totalorder %s34, 1
      %p52 = por %p50, %p51
      %p53 = scmp.ne.s32.totalorder %s42, %s43
      %p54 = scmp.eq.s32.totalorder %s34, 0
      %p55 = por %p53, %p54
      %p56 = scmp.ne.s32.totalorder %s42, %s43
      %p57 = scmp.eq.s32.totalorder %s35, 1
      %p58 = por %p56, %p57
      %p60 = scmp.ne.s32.totalorder %s43, %s59
      %p61 = scmp.eq.s32.totalorder %s35, 0
      %p62 = por %p60, %p61
      %s63 = ssub.s32 %s29, %s36
      %p64 = scmp.eq.s32.totalorder %s63, 0
      %s66 = sadd.s32 %s65, 1
      %s67 = scalar_select %p64, %s65, %s66
      %p70 = pneg %p64
      %p71 = scmp.eq.s32.totalorder %s29, 1
      %p72 = por %p70, %p71
      %p73 = scmp.ne.s32.totalorder %s65, %s68
      %p74 = scmp.eq.s32.totalorder %s29, 0
      %p75 = por %p73, %p74
      %p76 = scmp.ne.s32.totalorder %s65, %s68
      %p77 = scmp.eq.s32.totalorder %s34, 1
      %p78 = por %p76, %p77
      %p79 = scmp.ne.s32.totalorder %s68, %s69
      %p80 = scmp.eq.s32.totalorder %s34, 0
      %p81 = por %p79, %p80
      %p82 = scmp.ne.s32.totalorder %s68, %s69
      %p83 = scmp.eq.s32.totalorder %s35, 1
      %p84 = por %p82, %p83
      %p86 = scmp.ne.s32.totalorder %s69, %s85
      %p87 = scmp.eq.s32.totalorder %s35, 0
      %p88 = por %p86, %p87
      %s89 = ssub.s32 %s29, %s36
      %p90 = scmp.eq.s32.totalorder %s89, 0
      %s92 = sadd.s32 %s91, 1
      %s93 = scalar_select %p90, %s91, %s92
      %p96 = pneg %p90
      %p97 = scmp.eq.s32.totalorder %s29, 1
      %p98 = por %p96, %p97
      %p99 = scmp.ne.s32.totalorder %s91, %s94
      %p100 = scmp.eq.s32.totalorder %s29, 0
      %p101 = por %p99, %p100
      %p102 = scmp.ne.s32.totalorder %s91, %s94
      %p103 = scmp.eq.s32.totalorder %s34, 1
      %p104 = por %p102, %p103
      %p105 = scmp.ne.s32.totalorder %s94, %s95
      %p106 = scmp.eq.s32.totalorder %s34, 0
      %p107 = por %p105, %p106
      %p108 = scmp.ne.s32.totalorder %s94, %s95
      %p109 = scmp.eq.s32.totalorder %s35, 1
      %p110 = por %p108, %p109
      %p112 = scmp.ne.s32.totalorder %s95, %s111
      %p113 = scmp.eq.s32.totalorder %s35, 0
      %p114 = por %p112, %p113
      %s115 = ssub.s32 %s29, %s36
      %p116 = scmp.eq.s32.totalorder %s115, 0
      %s118 = sadd.s32 %s117, 1
      %s119 = scalar_select %p116, %s117, %s118
      %p122 = pneg %p116
      %p123 = scmp.eq.s32.totalorder %s29, 1
      %p124 = por %p122, %p123
      %p125 = scmp.ne.s32.totalorder %s117, %s120
      %p126 = scmp.eq.s32.totalorder %s29, 0
      %p127 = por %p125, %p126
      %p128 = scmp.ne.s32.totalorder %s117, %s120
      %p129 = scmp.eq.s32.totalorder %s34, 1
      %p130 = por %p128, %p129
      %p131 = scmp.ne.s32.totalorder %s120, %s121
      %p132 = scmp.eq.s32.totalorder %s34, 0
      %p133 = por %p131, %p132
      %p134 = scmp.ne.s32.totalorder %s120, %s121
      %p135 = scmp.eq.s32.totalorder %s35, 1
      %p136 = por %p134, %p135
      %p138 = scmp.ne.s32.totalorder %s121, %s137
      %p139 = scmp.eq.s32.totalorder %s35, 0
      %p140 = por %p138, %p139
      %s142 = sadd.s32 %s141, 1
      %p145 = scmp.eq.s32.totalorder %s29, 1
      %p146 = scmp.ne.s32.totalorder %s141, %s143
      %p147 = scmp.eq.s32.totalorder %s29, 0
      %p148 = por %p146, %p147
      %p149 = scmp.ne.s32.totalorder %s141, %s143
      %p150 = scmp.eq.s32.totalorder %s34, 1
      %p151 = por %p149, %p150
      %p152 = scmp.ne.s32.totalorder %s143, %s144
      %p153 = scmp.eq.s32.totalorder %s34, 0
      %p154 = por %p152, %p153
      %p155 = scmp.ne.s32.totalorder %s143, %s144
      %p156 = scmp.eq.s32.totalorder %s35, 1
      %p157 = por %p155, %p156
      %p159 = scmp.ne.s32.totalorder %s144, %s158
      %p160 = scmp.eq.s32.totalorder %s35, 0
      %p161 = por %p159, %p160
      %s163 = sadd.s32 %s162, 1
      %p166 = scmp.eq.s32.totalorder %s29, 1
      %p167 = scmp.ne.s32.totalorder %s162, %s164
      %p168 = scmp.eq.s32.totalorder %s29, 0
      %p169 = por %p167, %p168
      %p170 = scmp.ne.s32.totalorder %s162, %s164
      %p171 = scmp.eq.s32.totalorder %s34, 1
      %p172 = por %p170, %p171
      %p173 = scmp.ne.s32.totalorder %s164, %s165
      %p174 = scmp.eq.s32.totalorder %s34, 0
      %p175 = por %p173, %p174
      %p176 = scmp.ne.s32.totalorder %s164, %s165
      %p177 = scmp.eq.s32.totalorder %s35, 1
      %p178 = por %p176, %p177
      %p180 = scmp.ne.s32.totalorder %s165, %s179
      %p181 = scmp.eq.s32.totalorder %s35, 0
      %p182 = por %p180, %p181
      %s184 = sadd.s32 %s183, 1
      %p187 = scmp.eq.s32.totalorder %s29, 1
      %p188 = scmp.ne.s32.totalorder %s183, %s185
      %p189 = scmp.eq.s32.totalorder %s29, 0
      %p190 = por %p188, %p189
      %p191 = scmp.ne.s32.totalorder %s183, %s185
      %p192 = scmp.eq.s32.totalorder %s34, 1
      %p193 = por %p191, %p192
      %p194 = scmp.ne.s32.totalorder %s185, %s186
      %p195 = scmp.eq.s32.totalorder %s34, 0
      %p196 = por %p194, %p195
      %p197 = scmp.ne.s32.totalorder %s185, %s186
      %p198 = scmp.eq.s32.totalorder %s35, 1
      %p199 = por %p197, %p198
      %p201 = scmp.ne.s32.totalorder %s186, %s200
      %p202 = scmp.eq.s32.totalorder %s35, 0
      %p203 = por %p201, %p202
      %s205 = sadd.s32 %s204, 1
      %p208 = scmp.eq.s32.totalorder %s29, 1
      %p209 = scmp.ne.s32.totalorder %s204, %s206
      %p210 = scmp.eq.s32.totalorder %s29, 0
      %p211 = por %p209, %p210
      %p212 = scmp.ne.s32.totalorder %s204, %s206
      %p213 = scmp.eq.s32.totalorder %s34, 1
      %p214 = por %p212, %p213
      %p215 = scmp.ne.s32.totalorder %s206, %s207
      %p216 = scmp.eq.s32.totalorder %s34, 0
      %p217 = por %p215, %p216
      %p218 = scmp.ne.s32.totalorder %s206, %s207
      %p219 = scmp.eq.s32.totalorder %s35, 1
      %p220 = por %p218, %p219
      %p222 = scmp.ne.s32.totalorder %s207, %s221
      %p223 = scmp.eq.s32.totalorder %s35, 0
      %p224 = por %p222, %p223
      %s226 = sadd.s32 %s225, 1
      %p229 = scmp.eq.s32.totalorder %s29, 1
      %p230 = scmp.ne.s32.totalorder %s225, %s227
      %p231 = scmp.eq.s32.totalorder %s29, 0
      %p232 = por %p230, %p231
      %p233 = scmp.ne.s32.totalorder %s225, %s227
      %p234 = scmp.eq.s32.totalorder %s34, 1
      %p235 = por %p233, %p234
      %p236 = scmp.ne.s32.totalorder %s227, %s228
      %p237 = scmp.eq.s32.totalorder %s34, 0
      %p238 = por %p236, %p237
      %p239 = scmp.ne.s32.totalorder %s227, %s228
      %p240 = scmp.eq.s32.totalorder %s35, 1
      %p241 = por %p239, %p240
      %p243 = scmp.ne.s32.totalorder %s228, %s242
      %p244 = scmp.eq.s32.totalorder %s35, 0
      %p245 = por %p243, %p244
      %s247 = sadd.s32 %s246, 1
      %p250 = scmp.eq.s32.totalorder %s29, 1
      %p251 = scmp.ne.s32.totalorder %s246, %s248
      %p252 = scmp.eq.s32.totalorder %s29, 0
      %p253 = por %p251, %p252
      %p254 = scmp.ne.s32.totalorder %s246, %s248
      %p255 = scmp.eq.s32.totalorder %s34, 1
      %p256 = por %p254, %p255
      %p257 = scmp.ne.s32.totalorder %s248, %s249
      %p258 = scmp.eq.s32.totalorder %s34, 0
      %p259 = por %p257, %p258
      %p260 = scmp.ne.s32.totalorder %s248, %s249
      %p261 = scmp.eq.s32.totalorder %s35, 1
      %p262 = por %p260, %p261
      %p264 = scmp.ne.s32.totalorder %s249, %s263
      %p265 = scmp.eq.s32.totalorder %s35, 0
      %p266 = por %p264, %p265
      %s268 = sadd.s32 %s267, 1
      %p271 = scmp.eq.s32.totalorder %s29, 1
      %p272 = scmp.ne.s32.totalorder %s267, %s269
      %p273 = scmp.eq.s32.totalorder %s29, 0
      %p274 = por %p272, %p273
      %p275 = scmp.ne.s32.totalorder %s267, %s269
      %p276 = scmp.eq.s32.totalorder %s34, 1
      %p277 = por %p275, %p276
      %p278 = scmp.ne.s32.totalorder %s269, %s270
      %p279 = scmp.eq.s32.totalorder %s34, 0
      %p280 = por %p278, %p279
      %p281 = scmp.ne.s32.totalorder %s269, %s270
      %p282 = scmp.eq.s32.totalorder %s35, 1
      %p283 = por %p281, %p282
      %p285 = scmp.ne.s32.totalorder %s270, %s284
      %p286 = scmp.eq.s32.totalorder %s35, 0
      %p287 = por %p285, %p286
      %s289 = sadd.s32 %s288, 1
      %p292 = scmp.eq.s32.totalorder %s29, 1
      %p293 = scmp.ne.s32.totalorder %s288, %s290
      %p294 = scmp.eq.s32.totalorder %s29, 0
      %p295 = por %p293, %p294
      %p296 = scmp.ne.s32.totalorder %s288, %s290
      %p297 = scmp.eq.s32.totalorder %s34, 1
      %p298 = por %p296, %p297
      %p299 = scmp.ne.s32.totalorder %s290, %s291
      %p300 = scmp.eq.s32.totalorder %s34, 0
      %p301 = por %p299, %p300
      %p302 = scmp.ne.s32.totalorder %s290, %s291
      %p303 = scmp.eq.s32.totalorder %s35, 1
      %p304 = por %p302, %p303
      %p306 = scmp.ne.s32.totalorder %s291, %s305
      %p307 = scmp.eq.s32.totalorder %s35, 0
      %p308 = por %p306, %p307
      %s309 = ssub.s32 %s29, %s36
      %p310 = scmp.eq.s32.totalorder %s309, 0
      %s312 = sadd.s32 %s311, 1
      %s313 = scalar_select %p310, %s311, %s312
      %p316 = pneg %p310
      %p317 = scmp.eq.s32.totalorder %s29, 1
      %p318 = por %p316, %p317
      %p319 = scmp.ne.s32.totalorder %s311, %s314
      %p320 = scmp.eq.s32.totalorder %s29, 0
      %p321 = por %p319, %p320
      %p322 = scmp.ne.s32.totalorder %s311, %s314
      %p323 = scmp.eq.s32.totalorder %s34, 1
      %p324 = por %p322, %p323
      %p325 = scmp.ne.s32.totalorder %s314, %s315
      %p326 = scmp.eq.s32.totalorder %s34, 0
      %p327 = por %p325, %p326
      %p328 = scmp.ne.s32.totalorder %s314, %s315
      %p329 = scmp.eq.s32.totalorder %s35, 1
      %p330 = por %p328, %p329
      %p332 = scmp.ne.s32.totalorder %s315, %s331
      %p333 = scmp.eq.s32.totalorder %s35, 0
      %p334 = por %p332, %p333
      %p335 = scmp.le.s32.totalorder 1, %s29
      %p336 = scmp.lt.s32.totalorder %s29, 3
      %p337 = pnand %p335, %p336
      %p338 = pneg %p337
      // Predicated region
      $region9: #{tpu_custom_call.1} parent=5 // pred_check
        _
      $region10: #{tpu_custom_call.1} parent=5 // pred_check_branch
        %340 = sbr.rel (%p337) target = $region12
      $region11: #{tpu_custom_call.1} parent=5 // pred_region
        %s341 = ssub.s32 %s29, 1
        // Predicated region
        $region13: #{tpu_custom_call.1} parent=11 // pred_check
          %p342 = pneg %p154
        $region14: #{tpu_custom_call.1} parent=11 // pred_check_branch
          %344 = sbr.rel (%p342) target = $region16
        $region15: #{tpu_custom_call.1} parent=11 // pred_region
          _
        $region16: #{tpu_custom_call.1} parent=11 // pred_fallthru
          _
        // Predicated region
        $region17: #{tpu_custom_call.1} parent=11 // pred_check
          %p345 = pneg %p175
        $region18: #{tpu_custom_call.1} parent=11 // pred_check_branch
          %347 = sbr.rel (%p345) target = $region20
        $region19: #{tpu_custom_call.1} parent=11 // pred_region
          %349 = vsyncadd [#allocation6], 0
          %s350 = sshll.u32 %s5, 4
          %s351 = int_to_ptr.hbm [resolvable:$true] %s350
          %s352 = sshll.u32 [#allocation7], 4
          %s353 = int_to_ptr.vmem [resolvable:$true] %s352
          %358 = dma.hbm_to_vmem [thread:$0]  %s351, 512, %s353, [#allocation6], 128, 128, 8
        $region20: #{tpu_custom_call.1} parent=11 // pred_fallthru
          _
        // Predicated region
        $region21: #{tpu_custom_call.1} parent=11 // pred_check
          %p359 = pneg %p196
        $region22: #{tpu_custom_call.1} parent=11 // pred_check_branch
          %361 = sbr.rel (%p359) target = $region24
        $region23: #{tpu_custom_call.1} parent=11 // pred_region
          %363 = vsyncadd [#allocation9], 0
          %s364 = sshll.u32 %s6, 4
          %s365 = int_to_ptr.hbm [resolvable:$true] %s364
          %s366 = sshll.u32 [#allocation8], 4
          %s367 = int_to_ptr.vmem [resolvable:$true] %s366
          %372 = dma.hbm_to_vmem [thread:$0]  %s365, 256, %s367, [#allocation9], 128, 128, 8
        $region24: #{tpu_custom_call.1} parent=11 // pred_fallthru
          _
        // Predicated region
        $region25: #{tpu_custom_call.1} parent=11 // pred_check
          %p373 = pneg %p217
        $region26: #{tpu_custom_call.1} parent=11 // pred_check_branch
          %375 = sbr.rel (%p373) target = $region28
        $region27: #{tpu_custom_call.1} parent=11 // pred_region
          _
        $region28: #{tpu_custom_call.1} parent=11 // pred_fallthru
          _
        // Predicated region
        $region29: #{tpu_custom_call.1} parent=11 // pred_check
          %p376 = pneg %p238
        $region30: #{tpu_custom_call.1} parent=11 // pred_check_branch
          %378 = sbr.rel (%p376) target = $region32
        $region31: #{tpu_custom_call.1} parent=11 // pred_region
          %380 = vsyncadd [#allocation9], 0
          %s381 = sshll.u32 %s8, 4
          %s382 = int_to_ptr.hbm [resolvable:$true] %s381
          %s383 = sshll.u32 [#allocation10], 4
          %s384 = int_to_ptr.vmem [resolvable:$true] %s383
          %389 = dma.hbm_to_vmem [thread:$0]  %s382, 512, %s384, [#allocation9], 128, 128, 8
        $region32: #{tpu_custom_call.1} parent=11 // pred_fallthru
          _
        // Predicated region
        $region33: #{tpu_custom_call.1} parent=11 // pred_check
          %p390 = pneg %p259
        $region34: #{tpu_custom_call.1} parent=11 // pred_check_branch
          %392 = sbr.rel (%p390) target = $region36
        $region35: #{tpu_custom_call.1} parent=11 // pred_region
          _
        $region36: #{tpu_custom_call.1} parent=11 // pred_fallthru
          _
        // Predicated region
        $region37: #{tpu_custom_call.1} parent=11 // pred_check
          %p393 = pneg %p280
        $region38: #{tpu_custom_call.1} parent=11 // pred_check_branch
          %395 = sbr.rel (%p393) target = $region40
        $region39: #{tpu_custom_call.1} parent=11 // pred_region
          %397 = vsyncadd [#allocation12], 0
          %s398 = sshll.u32 %s10, 4
          %s399 = int_to_ptr.hbm [resolvable:$true] %s398
          %s400 = sshll.u32 [#allocation11], 4
          %s401 = int_to_ptr.vmem [resolvable:$true] %s400
          %406 = dma.hbm_to_vmem [thread:$0]  %s399, 512, %s401, [#allocation12], 128, 128, 8
        $region40: #{tpu_custom_call.1} parent=11 // pred_fallthru
          _
        // Predicated region
        $region41: #{tpu_custom_call.1} parent=11 // pred_check
          %p407 = pneg %p301
        $region42: #{tpu_custom_call.1} parent=11 // pred_check_branch
          %409 = sbr.rel (%p407) target = $region44
        $region43: #{tpu_custom_call.1} parent=11 // pred_region
          _
        $region44: #{tpu_custom_call.1} parent=11 // pred_fallthru
          _
      $region12: #{tpu_custom_call.1} parent=5 // pred_fallthru
        _
      %p410 = scmp.lt.s32.totalorder %s29, 2
      // Predicated region
      $region45: #{tpu_custom_call.1} parent=5 // pred_check
        %p411 = pneg %p410
      $region46: #{tpu_custom_call.1} parent=5 // pred_check_branch
        %413 = sbr.rel (%p411) target = $region48
      $region47: #{tpu_custom_call.1} parent=5 // pred_region
        // Predicated region
        $region49: #{tpu_custom_call.1} parent=47 // pred_check
          %p414 = pneg %p49
        $region50: #{tpu_custom_call.1} parent=47 // pred_check_branch
          %416 = sbr.rel (%p414) target = $region52
        $region51: #{tpu_custom_call.1} parent=47 // pred_region
          %s417 = sand.u32 %s39, 1
          %s418 = scalar_lea.sflag [#allocation3], %s417
          %s419 = sand.u32 %s39, 1
          %s420 = smul.addr %s419, 8
          %s421 = scalar_lea.vmem [#allocation2], %s420
          %423 = vsyncadd %s418, 0
          %s424 = smul.addr %s29, 8
          %s425 = scalar_lea.hbm %s0, %s424
          %s427 = sshll.u32 %s425, 4
          %s428 = int_to_ptr.hbm [resolvable:$true] %s427
          %s429 = sshll.u32 %s421, 4
          %s430 = int_to_ptr.vmem [resolvable:$true] %s429
          %432 = dma.hbm_to_vmem [thread:$0]  %s428, 128, %s430, %s418
        $region52: #{tpu_custom_call.1} parent=47 // pred_fallthru
          _
        // Predicated region
        $region53: #{tpu_custom_call.1} parent=47 // pred_check
          %p433 = pneg %p75
        $region54: #{tpu_custom_call.1} parent=47 // pred_check_branch
          %435 = sbr.rel (%p433) target = $region56
        $region55: #{tpu_custom_call.1} parent=47 // pred_region
          %s436 = sand.u32 %s29, 1
          %s437 = scalar_lea.sflag [#allocation6], %s436
          %s438 = sand.u32 %s65, 1
          %s439 = smul.addr %s438, 8
          %s440 = scalar_lea.vmem [#allocation5], %s439
          %442 = vsyncadd %s437, 0
          %s443 = smul.addr %s29, 8
          %s444 = scalar_lea.hbm %s1, %s443
          %s446 = sshll.u32 %s444, 4
          %s447 = int_to_ptr.hbm [resolvable:$true] %s446
          %s448 = sshll.u32 %s440, 4
          %s449 = int_to_ptr.vmem [resolvable:$true] %s448
          %451 = dma.hbm_to_vmem [thread:$0]  %s447, 128, %s449, %s437
        $region56: #{tpu_custom_call.1} parent=47 // pred_fallthru
          _
        // Predicated region
        $region57: #{tpu_custom_call.1} parent=47 // pred_check
          %p452 = pneg %p101
        $region58: #{tpu_custom_call.1} parent=47 // pred_check_branch
          %454 = sbr.rel (%p452) target = $region60
        $region59: #{tpu_custom_call.1} parent=47 // pred_region
          %p455 = scmp.lt.s32.totalorder %s29, 1
          %s456 = scalar_select %p455, %s29, 1
          %s457 = smul.addr %s456, 8
          %s458 = scalar_lea.vmem %s2, %s457
        $region60: #{tpu_custom_call.1} parent=47 // pred_fallthru
          _
        // Predicated region
        $region61: #{tpu_custom_call.1} parent=47 // pred_check
          %p459 = pneg %p127
        $region62: #{tpu_custom_call.1} parent=47 // pred_check_branch
          %461 = sbr.rel (%p459) target = $region64
        $region63: #{tpu_custom_call.1} parent=47 // pred_region
          %p462 = scmp.lt.s32.totalorder %s29, 1
          %s463 = scalar_select %p462, %s29, 1
          %s464 = smul.addr %s463, 8
          %s465 = scalar_lea.vmem %s3, %s464
        $region64: #{tpu_custom_call.1} parent=47 // pred_fallthru
          _
      $region48: #{tpu_custom_call.1} parent=5 // pred_fallthru
        _
      %p466 = scmp.le.s32.totalorder 1, %s29
      %p467 = scmp.lt.s32.totalorder %s29, 3
      %p468 = pnand %p466, %p467
      %p469 = pneg %p468
      // Predicated region
      $region65: #{tpu_custom_call.1} parent=5 // pred_check
        _
      $region66: #{tpu_custom_call.1} parent=5 // pred_check_branch
        %471 = sbr.rel (%p468) target = $region68
      $region67: #{tpu_custom_call.1} parent=5 // pred_region
        %s472 = ssub.s32 %s29, 1
        %s473 = sand.u32 %s42, 1
        %s474 = scalar_lea.sflag [#allocation3], %s473
        %s475 = sand.u32 %s42, 1
        %s476 = smul.addr %s475, 8
        %s477 = scalar_lea.vmem [#allocation2], %s476
        // Predicated region
        $region69: #{tpu_custom_call.1} parent=67 // pred_check
          %p478 = pneg %p55
        $region70: #{tpu_custom_call.1} parent=67 // pred_check_branch
          %480 = sbr.rel (%p478) target = $region72
        $region71: #{tpu_custom_call.1} parent=67 // pred_region
          %482 = dma.done %s474, 128
        $region72: #{tpu_custom_call.1} parent=67 // pred_fallthru
          _
        %s483 = sand.u32 %s34, 1
        %s484 = scalar_lea.sflag [#allocation6], %s483
        %s485 = sand.u32 %s68, 1
        %s486 = smul.addr %s485, 8
        %s487 = scalar_lea.vmem [#allocation5], %s486
        // Predicated region
        $region73: #{tpu_custom_call.1} parent=67 // pred_check
          %p488 = pneg %p81
        $region74: #{tpu_custom_call.1} parent=67 // pred_check_branch
          %490 = sbr.rel (%p488) target = $region76
        $region75: #{tpu_custom_call.1} parent=67 // pred_region
          %492 = dma.done %s484, 128
        $region76: #{tpu_custom_call.1} parent=67 // pred_fallthru
          _
        // Predicated region
        $region77: #{tpu_custom_call.1} parent=67 // pred_check
          %p493 = pneg %p175
        $region78: #{tpu_custom_call.1} parent=67 // pred_check_branch
          %495 = sbr.rel (%p493) target = $region80
        $region79: #{tpu_custom_call.1} parent=67 // pred_region
          %497 = dma.done [#allocation6], 512
        $region80: #{tpu_custom_call.1} parent=67 // pred_fallthru
          _
        // Predicated region
        $region81: #{tpu_custom_call.1} parent=67 // pred_check
          %p498 = pneg %p196
        $region82: #{tpu_custom_call.1} parent=67 // pred_check_branch
          %500 = sbr.rel (%p498) target = $region84
        $region83: #{tpu_custom_call.1} parent=67 // pred_region
          %502 = dma.done [#allocation9], 256
        $region84: #{tpu_custom_call.1} parent=67 // pred_fallthru
          _
        // Predicated region
        $region85: #{tpu_custom_call.1} parent=67 // pred_check
          %p503 = pneg %p238
        $region86: #{tpu_custom_call.1} parent=67 // pred_check_branch
          %505 = sbr.rel (%p503) target = $region88
        $region87: #{tpu_custom_call.1} parent=67 // pred_region
          %507 = dma.done [#allocation9], 512
        $region88: #{tpu_custom_call.1} parent=67 // pred_fallthru
          _
        // Predicated region
        $region89: #{tpu_custom_call.1} parent=67 // pred_check
          %p508 = pneg %p280
        $region90: #{tpu_custom_call.1} parent=67 // pred_check_branch
          %510 = sbr.rel (%p508) target = $region92
        $region91: #{tpu_custom_call.1} parent=67 // pred_region
          %512 = dma.done [#allocation12], 512
        $region92: #{tpu_custom_call.1} parent=67 // pred_fallthru
          _
        %s513 = sand.u32 %s42, 1
        %s514 = scalar_lea.sflag [#allocation3], %s513
        %s515 = sand.u32 %s42, 1
        %s516 = smul.addr %s515, 8
        %s517 = scalar_lea.vmem [#allocation2], %s516
        %p518 = pneg %p55
        %p519 = pneg %p52
        %s520 = sand.u32 %s34, 1
        %s521 = scalar_lea.sflag [#allocation6], %s520
        %s522 = sand.u32 %s68, 1
        %s523 = smul.addr %s522, 8
        %s524 = scalar_lea.vmem [#allocation5], %s523
        %p525 = pneg %p81
        %p526 = pneg %p78
        %p527 = scmp.lt.s32.totalorder %s34, 1
        %s528 = scalar_select %p527, %s34, 1
        %s529 = smul.addr %s528, 8
        %s530 = scalar_lea.vmem %s2, %s529
        %p531 = pneg %p107
        %p532 = pneg %p104
        %p533 = scmp.lt.s32.totalorder %s34, 1
        %s534 = scalar_select %p533, %s34, 1
        %s535 = smul.addr %s534, 8
        %s536 = scalar_lea.vmem %s3, %s535
        %p537 = pneg %p133
        %p538 = pneg %p130
        %p539 = pneg %p154
        %p540 = pneg %p151
        %p541 = pneg %p175
        %p542 = pneg %p172
        %p543 = pneg %p196
        %p544 = pneg %p193
        %p545 = pneg %p217
        %p546 = pneg %p214
        %p547 = pneg %p238
        %p548 = pneg %p235
        %p549 = pneg %p259
        %p550 = pneg %p256
        %p551 = pneg %p280
        %p552 = pneg %p277
        %p553 = pneg %p301
        %p554 = pneg %p298
        %p555 = pneg %p327
        %p556 = pneg %p324
        %s557 = sand.u32 %s314, 1
        %s558 = scalar_lea.sflag [#allocation4], %s557
        %s559 = sand.u32 %s314, 1
        %s560 = smul.addr %s559, 8
        %s561 = scalar_lea.vmem [#allocation13], %s560
        %p562 = scmp.lt.s32.totalorder %s34, 1
        %s563 = scalar_select %p562, %s34, 1
        %s564 = smul.addr %s563, 8
        %s565 = scalar_lea.vmem %s2, %s564
        %p566 = scmp.lt.s32.totalorder %s34, 1
        %s567 = scalar_select %p566, %s34, 1
        %s568 = smul.addr %s567, 8
        %s569 = scalar_lea.vmem %s3, %s568
        %v570 = vld [vmem:[%s477] sm:$0xff]
        %v571 = vld [vmem:[%s487] sm:$0xff]
        %v572 = vlaneseq
        %v573 = vand.u32 %v572, 127
        %v574 = vld [vmem:[%s565] sm:$0xff]
        %575 = vset.pattern.permute.xlu0 0
        %576 = vperm.xlu0 %575, %v574
        %v577 = vpop.permute.xlu0 %576
        %vm578 = vcmp.eq.s32.totalorder %v573, %v577
        %v579 = vld [vmem:[%s569] sm:$0xff]
        %v580 = vadd.s32 %v579, 5
        %581 = vset.pattern.permute.xlu0 0
        %582 = vperm.xlu0 %581, %v580
        %v583 = vpop.permute.xlu0 %582
        %vm584 = vcmp.eq.s32.totalorder %v573, %v583
        %vm585 = vmor %vm578, %vm584
        %v586 = vsel %vm585, 1, 0
        %v587 = vcvt.s32.f32 %v586
        %v588 = vld [vmem:[%s4] sm:$0xff]
        %v589 = vld [vmem:[%s4 + $0x8] sm:$0xff]
        %v590 = vld [vmem:[%s4 + $0x10] sm:$0xff]
        %v591 = vld [vmem:[%s4 + $0x18] sm:$0xff]
        %v592 = vld [vmem:[#allocation7] sm:$0xff]
        %v593 = vld [vmem:[#allocation7 + $0x8] sm:$0xff]
        %v594 = vld [vmem:[#allocation7 + $0x10] sm:$0xff]
        %v595 = vld [vmem:[#allocation7 + $0x18] sm:$0xff]
        %vm596 = vcmask 261120
        %v598 = vsel %vm596, %v571, 0
        %600 = vmatpush.msra.mxu0 0.0
        %601 = vmatpush.msra.mxu0 0.0
        %602 = vmatpush.msra.mxu0 0.0
        %603 = vmatpush.msra.mxu0 0.0
        %604 = vmatpush.msra.mxu0 0.0
        %605 = vmatpush.msra.mxu0 0.0
        %606 = vmatpush.msra.mxu0 0.0
        %607 = vmatpush.msra.mxu0 0.0
        %608 = vmatpush.msra.mxu0 0.0
        %609 = vmatpush.msra.mxu0 0.0
        %610 = vmatpush.msra.mxu0 0.0
        %611 = vmatpush.msra.mxu0 0.0
        %612 = vmatpush.msra.mxu0 %v595
        %613 = vmatpush.msra.mxu0 %v594
        %614 = vmatpush.msra.mxu0 %v593
        %615 = vmatpush.msra.mxu0 %v592
        %616 = vmatmul.f32.gmra.mxu0 %v598
        %v617 = vpop.f32.mrf.mxu0
        %v618 = vadd.f32 0.0, %v617
        %619 = vdwg.mxu0
        %v621 = vsel %vm596, %v570, 0
        %623 = vmatpush.msra.mxu0 0.0
        %624 = vmatpush.msra.mxu0 0.0
        %625 = vmatpush.msra.mxu0 0.0
        %626 = vmatpush.msra.mxu0 0.0
        %627 = vmatpush.msra.mxu0 0.0
        %628 = vmatpush.msra.mxu0 0.0
        %629 = vmatpush.msra.mxu0 0.0
        %630 = vmatpush.msra.mxu0 0.0
        %631 = vmatpush.msra.mxu0 0.0
        %632 = vmatpush.msra.mxu0 0.0
        %633 = vmatpush.msra.mxu0 0.0
        %634 = vmatpush.msra.mxu0 0.0
        %635 = vmatpush.msra.mxu0 %v591
        %636 = vmatpush.msra.mxu0 %v590
        %637 = vmatpush.msra.mxu0 %v589
        %638 = vmatpush.msra.mxu0 %v588
        %639 = vmatmul.f32.gmra.mxu0 %v621
        %v640 = vpop.f32.mrf.mxu0
        %v641 = vadd.f32 %v618, %v640
        %642 = vdwg.mxu0
        %v643 = vld [vmem:[#allocation8] sm:$0xff]
        %v644 = vld [vmem:[#allocation8 + $0x8] sm:$0xff]
        %vm645 = vcmask 130048
        %v647 = vsel %vm645, %v587, 0
        %649 = vmatpush.msra.mxu0 0.0
        %650 = vmatpush.msra.mxu0 0.0
        %651 = vmatpush.msra.mxu0 0.0
        %652 = vmatpush.msra.mxu0 0.0
        %653 = vmatpush.msra.mxu0 0.0
        %654 = vmatpush.msra.mxu0 0.0
        %655 = vmatpush.msra.mxu0 0.0
        %656 = vmatpush.msra.mxu0 0.0
        %657 = vmatpush.msra.mxu0 0.0
        %658 = vmatpush.msra.mxu0 0.0
        %659 = vmatpush.msra.mxu0 0.0
        %660 = vmatpush.msra.mxu0 0.0
        %661 = vmatpush.msra.mxu0 0.0
        %662 = vmatpush.msra.mxu0 0.0
        %663 = vmatpush.msra.mxu0 %v644
        %664 = vmatpush.msra.mxu0 %v643
        %665 = vmatmul.f32.gmra.mxu0 %v647
        %v666 = vpop.f32.mrf.mxu0
        %v667 = vadd.f32 0.0, %v666
        %668 = vdwg.mxu0
        %v669 = vadd.f32 %v641, %v667
        %v670 = vld [vmem:[%s7] sm:$0x1]
        %v672 = vperm.slane %v670, 0
        %v674 = vadd.f32 %v669, %v672
        %v675 = vmax.f32 %v674, 0.0
        %v676 = vld [vmem:[#allocation10] sm:$0xff]
        %v677 = vld [vmem:[#allocation10 + $0x8] sm:$0xff]
        %v678 = vld [vmem:[#allocation10 + $0x10] sm:$0xff]
        %v679 = vld [vmem:[#allocation10 + $0x18] sm:$0xff]
        %v680 = vld [vmem:[%s9] sm:$0x1]
        %v682 = vperm.slane %v680, 0
        %v685 = vsel %vm596, %v675, 0
        %687 = vmatpush.msra.mxu0 0.0
        %688 = vmatpush.msra.mxu0 0.0
        %689 = vmatpush.msra.mxu0 0.0
        %690 = vmatpush.msra.mxu0 0.0
        %691 = vmatpush.msra.mxu0 0.0
        %692 = vmatpush.msra.mxu0 0.0
        %693 = vmatpush.msra.mxu0 0.0
        %694 = vmatpush.msra.mxu0 0.0
        %695 = vmatpush.msra.mxu0 0.0
        %696 = vmatpush.msra.mxu0 0.0
        %697 = vmatpush.msra.mxu0 0.0
        %698 = vmatpush.msra.mxu0 0.0
        %699 = vmatpush.msra.mxu0 %v679
        %700 = vmatpush.msra.mxu0 %v678
        %701 = vmatpush.msra.mxu0 %v677
        %702 = vmatpush.msra.mxu0 %v676
        %703 = vmatmul.f32.gmra.mxu0 %v685
        %v704 = vpop.f32.mrf.mxu0
        %v705 = vadd.f32 %v682, %v704
        %706 = vdwg.mxu0
        %v707 = vmax.f32 %v705, 0.0
        %v708 = vld [vmem:[#allocation11] sm:$0xff]
        %v709 = vld [vmem:[#allocation11 + $0x8] sm:$0xff]
        %v710 = vld [vmem:[#allocation11 + $0x10] sm:$0xff]
        %v711 = vld [vmem:[#allocation11 + $0x18] sm:$0xff]
        %v712 = vld [vmem:[%s11] sm:$0x1]
        %v714 = vperm.slane %v712, 0
        %v717 = vsel %vm596, %v707, 0
        %719 = vmatpush.msra.mxu0 0.0
        %720 = vmatpush.msra.mxu0 0.0
        %721 = vmatpush.msra.mxu0 0.0
        %722 = vmatpush.msra.mxu0 0.0
        %723 = vmatpush.msra.mxu0 0.0
        %724 = vmatpush.msra.mxu0 0.0
        %725 = vmatpush.msra.mxu0 0.0
        %726 = vmatpush.msra.mxu0 0.0
        %727 = vmatpush.msra.mxu0 0.0
        %728 = vmatpush.msra.mxu0 0.0
        %729 = vmatpush.msra.mxu0 0.0
        %730 = vmatpush.msra.mxu0 0.0
        %731 = vmatpush.msra.mxu0 %v711
        %732 = vmatpush.msra.mxu0 %v710
        %733 = vmatpush.msra.mxu0 %v709
        %734 = vmatpush.msra.mxu0 %v708
        %735 = vmatmul.f32.gmra.mxu0 %v717
        %v736 = vpop.f32.mrf.mxu0
        %v737 = vadd.f32 %v714, %v736
        %738 = vdwg.mxu0
        %v739 = vadd.f32 %v570, %v571
        %v740 = vmul.f32 %v739, 0.5
        %v741 = vadd.f32 %v740, %v737
        %742 = vst.msk [vmem:[%s561] sm:$0xff] %vm596, %v741
        %s743 = sand.u32 %s314, 1
        %s744 = scalar_lea.sflag [#allocation4], %s743
        %s745 = sand.u32 %s314, 1
        %s746 = smul.addr %s745, 8
        %s747 = scalar_lea.vmem [#allocation13], %s746
        // Predicated region
        $region93: #{tpu_custom_call.1} parent=67 // pred_check
          %p748 = pneg %p324
        $region94: #{tpu_custom_call.1} parent=67 // pred_check_branch
          %750 = sbr.rel (%p748) target = $region96
        $region95: #{tpu_custom_call.1} parent=67 // pred_region
          %752 = vsyncadd %s744, 0
          %s753 = smul.addr %s34, 8
          %s754 = scalar_lea.hbm %s12, %s753
          %s756 = sshll.u32 %s747, 4
          %s757 = int_to_ptr.vmem [resolvable:$true] %s756
          %s758 = sshll.u32 %s754, 4
          %s759 = int_to_ptr.hbm [resolvable:$true] %s758
          %761 = dma.vmem_to_hbm [thread:$0]  %s757, 128, %s759, %s744
        $region96: #{tpu_custom_call.1} parent=67 // pred_fallthru
          _
      $region68: #{tpu_custom_call.1} parent=5 // pred_fallthru
        _
      %p762 = scmp.le.s32.totalorder 2, %s29
      // Predicated region
      $region97: #{tpu_custom_call.1} parent=5 // pred_check
        %p763 = pneg %p762
      $region98: #{tpu_custom_call.1} parent=5 // pred_check_branch
        %765 = sbr.rel (%p763) target = $region100
      $region99: #{tpu_custom_call.1} parent=5 // pred_region
        %s766 = ssub.s32 %s29, 2
        // Predicated region
        $region101: #{tpu_custom_call.1} parent=99 // pred_check
          %p767 = pneg %p330
        $region102: #{tpu_custom_call.1} parent=99 // pred_check_branch
          %769 = sbr.rel (%p767) target = $region104
        $region103: #{tpu_custom_call.1} parent=99 // pred_region
          %s770 = sand.u32 %s315, 1
          %s771 = scalar_lea.sflag [#allocation4], %s770
          %s772 = sand.u32 %s315, 1
          %s773 = smul.addr %s772, 8
          %s774 = scalar_lea.vmem [#allocation13], %s773
          %776 = dma.done %s771, 128
        $region104: #{tpu_custom_call.1} parent=99 // pred_fallthru
          _
      $region100: #{tpu_custom_call.1} parent=5 // pred_fallthru
        _
    $region6: #{tpu_custom_call.1} parent=1 // loop_footer
      %s33 = sadd.s32 1, %s29
    $region7: #{tpu_custom_call.1} parent=1 // loop_footer_branch
      %28 = sbr.rel target = $region3
    $region8: #{tpu_custom_call.1} parent=1 // loop_exit
      _
    %777 = vsyncpa [#allocation3], 1
    %s778 = scalar_lea.sflag [#allocation3], 1
    %779 = vsyncpa %s778, 1
    %780 = vsyncpa [#allocation6], 1
    %s781 = scalar_lea.sflag [#allocation6], 1
    %782 = vsyncpa %s781, 1
    %783 = vsyncpa [#allocation9], 1
    %784 = vsyncpa [#allocation12], 1
    %785 = vsyncpa [#allocation4], 1
    %s786 = scalar_lea.sflag [#allocation4], 1
    %787 = vsyncpa %s786, 1

</llo_original>
